<compile_context>
chip_gen: v6e
topology: v6e:2x2x1
jax: 0.10.0
libtpu: 0.0.40
codegen_flags: <defaults>
</compile_context>

<pallas_src>
import math
from functools import partial

import numpy as np
import jax
import jax.numpy as jnp
from jax.experimental import pallas as pl
from jax.experimental.pallas import tpu as pltpu  # noqa: F401  (kept for TPU-specific params if needed)

PAD_W = 128      # lane-dense output width (one 128-lane vreg)
ROW_PAD = 8      # pad batch rows to a multiple of the 8-sublane tile


def _round_up(n, m):
    return ((n + m - 1) // m) * m


def _wslab_layout(hidden, d_size, t_feats, edge_feats, heads):
    """Row offsets of each weight block inside the single packed weight slab.
    Every block starts at a multiple-of-8 row offset."""
    ph = _round_up(d_size, 8)
    auxw = _round_up(2 + edge_feats, 8)
    offs = {}
    off = 0

    def add(name, n):
        nonlocal off
        offs[name] = off
        off += _round_up(n, 8)

    add("wq", PAD_W)           # (128, heads*ph)  rows >= hidden are zero; * 1/sqrt(D)
    add("wkx", PAD_W)          # (128, 2*heads*ph) rows >= hidden are zero
    add("wkt", t_feats)        # (t_feats, 2*heads*ph) * tk_norm
    add("wka", auxw)           # (auxw, 2*heads*ph) rels rows only, ts/mask rows zero
    add("wf", heads * ph)      # per-head fc blocks, (ph, ph) each
    add("w1x", PAD_W)          # (128, hidden) rows >= hidden zero
    add("w1v", ph)             # (ph, hidden) rows >= d_size zero
    add("w2", hidden)          # (hidden, 128) cols >= hidden zero
    add("w3", PAD_W)           # (128, 128) rows >= hidden zero, cols >= out zero
    return offs, off


# ------------------------------ Pallas kernels ------------------------------

def _proj_in_kernel(x_ref, w_ref, o_ref, *, in_feats, b_row):
    # Linear + ReLU.  Weight slab row layout: rows [0:in_feats] = W^T (cols
    # zero-padded to 128), row b_row = bias.  Lane-dense (M, 128) store.
    y = (jnp.dot(x_ref[...], w_ref[0:in_feats, :], preferred_element_type=jnp.float32)
         + w_ref[b_row:b_row + 1, :])
    o_ref[...] = jnp.maximum(y, 0.0)


def proj_in_pallas(xg, proj_slab, *, in_feats):
    M = xg.shape[0]
    kern = partial(_proj_in_kernel, in_feats=in_feats, b_row=_round_up(in_feats, 8))
    return pl.pallas_call(
        kern, out_shape=jax.ShapeDtypeStruct((M, PAD_W), jnp.float32),
    )(xg, proj_slab)


def _tgat_layer_kernel(src_ref, nei_ref, aux_ref, ws_ref, ss_ref, o_ref, *,
                       n_head, hidden, d_size, t_feats, edge_feats, nsize,
                       ph, eps, final, offs):
    """One fused TGAT layer: TimeKernel + MHA + residual + LayerNorm + merge MLP
    (+ proj_out/tanh at the top layer).  All weights come from two packed slabs.

      src_ref : (B, 128)      lower-layer features, lanes >= hidden are zero
      nei_ref : (B*NS, 128)   lower-layer neighbor features (already gathered)
      aux_ref : (B*NS, AUXW)  lane 0 = ts, lanes 1..E = rels,
                              lane 1+E of rows [0:B] = per-batch-row mask
      ws_ref  : (WR, 128)     packed weight slab (see _wslab_layout)
      ss_ref  : (8, 128)      packed scalar rows
    """
    B = src_ref.shape[0]
    D = d_size
    PH = ph
    QW = n_head * PH
    E = edge_feats

    src = src_ref[...]                                   # (B, 128)
    nei = nei_ref[...]                                   # (B*NS, 128)
    aux = aux_ref[...]                                   # (B*NS, AUXW)

    # --- TimeKernel(ts): interleaved [sin, cos] via one phase-shifted sine ---
    ts = aux[:, 0:1]
    te = jnp.sin(ts * ss_ref[0:1, 0:t_feats] + ss_ref[0:1, t_feats:2 * t_feats])

    # --- Q projection (1/sqrt(D) folded); te_src/src_param part is a const row ---
    q_h = (jnp.dot(src, ws_ref[offs["wq"]:offs["wq"] + PAD_W, 0:QW],
                   preferred_element_type=jnp.float32)
           + ss_ref[1:2, 0:QW])                          # (B, QW)

    # --- K|V projection as partial matmuls (no lane concat); tk_norm folded
    #     into the te rows; rels come straight off the packed aux slab. ---
    kv = (jnp.dot(nei, ws_ref[offs["wkx"]:offs["wkx"] + PAD_W, :],
                  preferred_element_type=jnp.float32)
          + jnp.dot(te, ws_ref[offs["wkt"]:offs["wkt"] + t_feats, :],
                    preferred_element_type=jnp.float32)
          + jnp.dot(aux, ws_ref[offs["wka"]:offs["wka"] + aux.shape[1], :],
                    preferred_element_type=jnp.float32))  # (B*NS, 128)
    kv3 = kv.reshape(B, nsize, PAD_W)

    # --- residual + consts (fc bias + [0 | te_src | src_param]); heads
    #     accumulate their fc contribution directly into xr (no att concat). ---
    xr = src[:, 0:PH] + ss_ref[2:3, 0:PH]                 # (B, PH), pad lanes stay 0
    for h in range(n_head):                               # static unroll, tiny n_head
        qh = q_h[:, h * PH:(h + 1) * PH]                  # (B, PH)        32-aligned
        kh = kv3[:, :, h * PH:(h + 1) * PH]               # (B, NS, PH)
        vh = kv3[:, :, QW + h * PH:QW + (h + 1) * PH]     # (B, NS, PH)
        s = jnp.sum(qh[:, None, :] * kh, axis=-1)         # (B, NS)
        s = s - jnp.max(s, axis=-1, keepdims=True)
        ex = jnp.exp(s)
        p = ex * pl.reciprocal(jnp.sum(ex, axis=-1, keepdims=True), approx=True)
        oh = jnp.sum(p[:, :, None] * vh, axis=1)          # (B, PH)
        xr = xr + jnp.dot(
            oh, ws_ref[offs["wf"] + h * PH:offs["wf"] + (h + 1) * PH, 0:PH],
            preferred_element_type=jnp.float32)

    # --- LayerNorm over the true D lanes (pad lanes of xr are exactly zero) ---
    inv_d = 1.0 / D
    mu = jnp.sum(xr, axis=-1, keepdims=True) * inv_d
    var = jnp.sum(xr * xr, axis=-1, keepdims=True) * inv_d - mu * mu
    val = ((xr - mu) * jax.lax.rsqrt(var + eps) * ss_ref[3:4, 0:PH]
           + ss_ref[4:5, 0:PH])                           # pads -> 0 (g,b padded 0)

    # --- leaf rows (no spawn edges) contribute zero, as in the reference ---
    full_val = val * aux[0:B, 1 + E:2 + E]                # (B, PH)

    # --- merge MLP as partial matmuls; h2 is produced lane-dense (B, 128) ---
    h1 = jnp.maximum(
        jnp.dot(src, ws_ref[offs["w1x"]:offs["w1x"] + PAD_W, 0:hidden],
                preferred_element_type=jnp.float32)
        + jnp.dot(full_val, ws_ref[offs["w1v"]:offs["w1v"] + PH, 0:hidden],
                  preferred_element_type=jnp.float32)
        + ss_ref[5:6, 0:hidden], 0.0)                     # (B, hidden)
    h2 = (jnp.dot(h1, ws_ref[offs["w2"]:offs["w2"] + hidden, :],
                  preferred_element_type=jnp.float32)
          + ss_ref[6:7, :])                               # (B, 128), lanes >= hidden are 0

    if final:
        o_ref[...] = jnp.tanh(
            jnp.dot(h2, ws_ref[offs["w3"]:offs["w3"] + PAD_W, :],
                    preferred_element_type=jnp.float32) + ss_ref[7:8, :])
    else:
        o_ref[...] = h2


def tgat_layer_pallas(w_slab, s_slab, src, nei, aux, *, heads, hidden, d_size,
                      t_feats, edge_feats, nsize, final):
    B = src.shape[0]
    ph = _round_up(d_size, 8)
    offs, _ = _wslab_layout(hidden, d_size, t_feats, edge_feats, heads)
    kern = partial(_tgat_layer_kernel, n_head=heads, hidden=hidden, d_size=d_size,
                   t_feats=t_feats, edge_feats=edge_feats, nsize=nsize,
                   ph=ph, eps=1e-5, final=final, offs=offs)
    # grid=(): whole (tiny) batch in one invocation; defaults for VMEM placement.
    return pl.pallas_call(
        kern, out_shape=jax.ShapeDtypeStruct((B, PAD_W), jnp.float32),
    )(src, nei, aux, w_slab, s_slab)


# ----------------------- jitted per-layer device segments -------------------

@partial(jax.jit, static_argnames=("in_feats",))
def _level0_device(x, proj_slab, idx, *, in_feats):
    return proj_in_pallas(x[idx], proj_slab, in_feats=in_feats)


@partial(jax.jit, static_argnames=("B", "heads", "hidden", "d_size", "t_feats",
                                   "edge_feats", "nsize", "final"))
def _layer_device(w_slab, s_slab, lower, n_idx, aux, *, B, heads, hidden, d_size,
                  t_feats, edge_feats, nsize, final):
    src = lower[:B]
    nei = jnp.take(lower[B:], n_idx, axis=0)              # dedup-gather (B*NS, 128)
    return tgat_layer_pallas(w_slab, s_slab, src, nei, aux, heads=heads,
                             hidden=hidden, d_size=d_size, t_feats=t_feats,
                             edge_feats=edge_feats, nsize=nsize, final=final)


# ---------------------- one-time parameter layout prep ----------------------

def prepare_params(p, cfg):
    """Transpose to x @ W form, pad per-head columns to a 32-lane stride, fold
    1/sqrt(D) / tk_norm / TimeKernel(0) / src_param / biases into a few packed
    slabs.  Runs once."""
    hid, d, out = cfg["hidden"], cfg["d_size"], cfg["out"]
    t, t2 = cfg["t_feats"], cfg["t_feats"] // 2
    e, heads, in_feats = cfg["edge_feats"], cfg["heads"], cfg["in_feats"]
    ph = _round_up(d, 8)
    qw = heads * ph
    auxw = _round_up(2 + e, 8)
    assert 2 * qw <= PAD_W and hid <= PAD_W and out <= PAD_W and 2 * t <= PAD_W
    inv_temp = 1.0 / math.sqrt(d)
    tk_norm = cfg["tk_norm"]
    a = p["attn"]
    f = lambda x: np.asarray(x, np.float32)

    # TimeKernel, interleaved [sin, cos] layout (matches torch.stack(...,2).view):
    # cos realized as sin(x + pi/2); duplicated weights/biases per lane pair.
    tw = f(p["tk_w"]).reshape(t2)
    tb = f(p["tk_b"]).reshape(t2)
    tk_w_i = np.repeat(tw, 2)
    tk_b_i = np.repeat(tb, 2).copy()
    tk_b_i[1::2] += np.float32(np.pi / 2)
    te_src = (np.stack([np.sin(tb), np.cos(tb)], axis=-1).reshape(t) * tk_norm)
    src_param = f(p["src_param"]).reshape(e)

    def head_pad_cols(w):                    # (d_in, heads*d) -> (d_in, heads*ph)
        o = np.zeros((w.shape[0], qw), np.float32)
        for h in range(heads):
            o[:, h * ph:h * ph + d] = w[:, h * d:(h + 1) * d]
        return o

    wq_full = head_pad_cols(f(a["w_qs"]).T) * inv_temp     # (d, qw)
    wkv_full = np.concatenate(
        [head_pad_cols(f(a["w_ks"]).T), head_pad_cols(f(a["w_vs"]).T)], axis=1)  # (d, 2*qw)

    extra = np.concatenate([te_src, src_param])            # (t+e,)
    q_const = (extra[None, :] @ wq_full[hid:, :])[0]       # (qw,)

    # -------- scalar slab: one (8,128) tile --------
    ss = np.zeros((8, PAD_W), np.float32)
    ss[0, 0:t] = tk_w_i
    ss[0, t:2 * t] = tk_b_i
    ss[1, 0:qw] = q_const
    res = np.zeros((ph,), np.float32)
    res[0:d] = f(a["fc_b"])
    res[hid:hid + t] += te_src
    res[hid + t:d] += src_param
    ss[2, 0:ph] = res
    ss[3, 0:d] = f(a["ln_g"])
    ss[4, 0:d] = f(a["ln_b"])
    ss[5, 0:hid] = f(p["merge_b1"])
    ss[6, 0:hid] = f(p["merge_b2"])
    ss[7, 0:out] = f(p["proj_out_b"])

    # -------- weight slab --------
    offs, nrows = _wslab_layout(hid, d, t, e, heads)
    ws = np.zeros((nrows, PAD_W), np.float32)
    ws[offs["wq"]:offs["wq"] + hid, 0:qw] = wq_full[0:hid]
    ws[offs["wkx"]:offs["wkx"] + hid, 0:2 * qw] = wkv_full[0:hid]
    ws[offs["wkt"]:offs["wkt"] + t, 0:2 * qw] = wkv_full[hid:hid + t] * tk_norm
    ws[offs["wka"] + 1:offs["wka"] + 1 + e, 0:2 * qw] = wkv_full[hid + t:d]
    fcT = f(a["fc_w"]).T                                    # (heads*d, d)
    for h in range(heads):
        ws[offs["wf"] + h * ph:offs["wf"] + h * ph + d, 0:d] = fcT[h * d:(h + 1) * d]
    w1T = f(p["merge_w1"]).T                                # (hid+d, hid)
    ws[offs["w1x"]:offs["w1x"] + hid, 0:hid] = w1T[0:hid]
    ws[offs["w1v"]:offs["w1v"] + d, 0:hid] = w1T[hid:hid + d]
    ws[offs["w2"]:offs["w2"] + hid, 0:hid] = f(p["merge_w2"]).T
    ws[offs["w3"]:offs["w3"] + hid, 0:out] = f(p["proj_out_w"]).T

    # -------- proj_in slab: rows [0:in_feats] = W^T, row round_up(in_feats,8) = bias --------
    b_row = _round_up(in_feats, 8)
    pin = np.zeros((b_row + 8, PAD_W), np.float32)
    pin[0:in_feats, 0:hid] = f(p["proj_in_w"]).T
    pin[b_row, 0:hid] = f(p["proj_in_b"])

    return {"proj_in": jnp.asarray(pin),
            "w_slab": jnp.asarray(ws),
            "s_slab": jnp.asarray(ss),
            "aux_w": auxw}


# ------------------------------ host graph glue ------------------------------

class SyntheticGraph:
    def __init__(self, x, adj):
        self.x = x          # jnp [N, in_feats]
        self._adj = adj     # node -> (neighbors[int64], t[float32, deg, 1], rel[float32, deg, E])

    def get_one_hop(self, b):
        return self._adj[int(b)]


def _sample_neighbors(graph, batch_pad, cfg):
    """Host-side sampling (mirrors the reference loop) at FIXED padded shapes;
    ts / rels / mask are packed into one lane-dense aux slab."""
    ns, e = cfg["neighborhood_size"], cfg["edge_feats"]
    auxw = _round_up(2 + e, 8)
    bp = len(batch_pad)
    neigh = np.zeros((bp, ns), dtype=np.int64)
    aux = np.zeros((bp * ns, auxw), dtype=np.float32)
    mask = np.zeros((bp,), dtype=np.float32)
    for i, b in enumerate(batch_pad):
        n, t, r = graph.get_one_hop(int(b))
        spawn = r[:, 0] == 1
        n, t, r = n[spawn], t[spawn], r[spawn]
        if n.shape[0] == 0:
            continue                                   # leaf: masked out in-kernel
        mask[i] = 1.0
        idx = np.zeros((ns,), dtype=np.int64)          # reference's n.dim() == 1 branch
        t_s = t[idx]
        neigh[i] = n[idx]
        aux[i * ns:(i + 1) * ns, 0:1] = t_s.max() - t_s
        aux[i * ns:(i + 1) * ns, 1:1 + e] = r[idx]
    aux[:bp, 1 + e] = mask                             # per-batch-row mask, first bp rows
    return neigh.reshape(-1), aux


def _forward_padded(prep, graph, batch_pad, cfg, layer):
    """Fixed-shape forward: returns (len(batch_pad), 128) with the real features
    in the leading lanes (hidden for inner layers, out for the top layer)."""
    if layer == 0:
        return _level0_device(graph.x, prep["proj_in"],
                              jnp.asarray(batch_pad, jnp.int32),
                              in_feats=cfg["in_feats"])
    neigh_flat, aux = _sample_neighbors(graph, batch_pad, cfg)
    uniq, n_idx = np.unique(neigh_flat, return_inverse=True)      # dedup like the reference
    u_pad = _round_up(max(len(uniq), 1), ROW_PAD)
    uniq_pad = np.zeros((u_pad,), dtype=np.int64)
    uniq_pad[:len(uniq)] = uniq
    lower_idx = np.concatenate([np.asarray(batch_pad, np.int64), uniq_pad])
    lower = _forward_padded(prep, graph, lower_idx, cfg, layer - 1)   # fused src+neigh call
    return _layer_device(prep["w_slab"], prep["s_slab"], lower,
                         jnp.asarray(n_idx, jnp.int32), jnp.asarray(aux),
                         B=len(batch_pad), heads=cfg["heads"], hidden=cfg["hidden"],
                         d_size=cfg["d_size"], t_feats=cfg["t_feats"],
                         edge_feats=cfg["edge_feats"],
                         nsize=cfg["neighborhood_size"],
                         final=(layer == cfg["layers"]))


def tgat_forward_pallas(prep, graph, batch, cfg):
    bs = len(batch)
    bp = _round_up(max(bs, 1), ROW_PAD)
    batch_pad = np.zeros((bp,), dtype=np.int64)
    batch_pad[:bs] = np.asarray(batch, dtype=np.int64)
    out = _forward_padded(prep, graph, batch_pad, cfg, cfg["layers"])
    width = cfg["out"] if cfg["layers"] >= 1 else cfg["hidden"]
    return out[:bs, :width]


# -------------------- pure-JAX reference (PyTorch semantics) ----------------

def _ref_linear(x, w, b, act="none"):
    y = jnp.asarray(x, jnp.float32) @ w.T + b
    if act == "relu":
        y = jnp.maximum(y, 0.0)
    elif act == "tanh":
        y = jnp.tanh(y)
    return y


def _ref_mlp(x, w1, b1, w2, b2):
    h = jnp.maximum(jnp.asarray(x, jnp.float32) @ w1.T + b1, 0.0)
    return h @ w2.T + b2


def _ref_timekernel(t, w, b, norm, dim):
    # Faithful to the PyTorch TimeKernel: interleaved [sin, cos] layout.
    t = jnp.asarray(t, jnp.float32)
    wt = t @ jnp.asarray(w, jnp.float32).T + jnp.asarray(b, jnp.float32)
    return jnp.stack([jnp.sin(wt), jnp.cos(wt)], axis=2).reshape(t.shape[0], dim) * norm


def _ref_mha(q, kv, ap, heads):
    q = jnp.asarray(q, jnp.float32)
    kv = jnp.asarray(kv, jnp.float32)
    B, D = q.shape
    NS = kv.shape[1]
    qh = (q @ ap["w_qs"].T).reshape(B, heads, D)
    kh = (kv.reshape(B * NS, D) @ ap["w_ks"].T).reshape(B, NS, heads, D)
    vh = (kv.reshape(B * NS, D) @ ap["w_vs"].T).reshape(B, NS, heads, D)
    s = jnp.einsum("bhd,bkhd->bhk", qh, kh) / math.sqrt(D)
    a = jax.nn.softmax(s, axis=-1)
    o = jnp.einsum("bhk,bkhd->bhd", a, vh).reshape(B, heads * D)
    fc = o @ ap["fc_w"].T + ap["fc_b"]
    xr = fc + q
    mu = xr.mean(-1, keepdims=True)
    var = ((xr - mu) ** 2).mean(-1, keepdims=True)
    return (xr - mu) / jnp.sqrt(var + 1e-5) * ap["ln_g"] + ap["ln_b"]


def tgat_forward_ref(params, graph, batch, cfg, start_t=0.0, end_t=float("inf"), layer=None):
    layers = cfg["layers"]
    nsize = cfg["neighborhood_size"]
    t_feats = cfg["t_feats"]
    d_size = cfg["d_size"]
    if layer is None:
        layer = layers
    if layer == 0:
        idx = jnp.asarray(np.asarray(batch, dtype=np.int32))
        return _ref_linear(graph.x[idx], params["proj_in_w"], params["proj_in_b"], "relu")

    src_x = tgat_forward_ref(params, graph, batch, cfg, start_t, end_t, layer - 1)
    neighbor_data = [graph.get_one_hop(int(b)) for b in batch]

    bs = len(batch)
    non_leaf_nodes, neighbors, ts, rels = [], [], [], []
    for i in range(bs):
        n, t, r = neighbor_data[i]
        only_spawns = r[:, 0] == 1
        n, t, r = n[only_spawns], t[only_spawns], r[only_spawns]
        if n.shape[0] == 0:
            continue
        non_leaf_nodes.append(i)
        idx = np.zeros((nsize,), dtype=np.int64)    # n.dim() == 1 branch of the reference
        t_s = t[idx]
        neighbors.append(n[idx])
        ts.append(t_s.max() - t_s)
        rels.append(r[idx])

    non_leaf_nodes = np.asarray(non_leaf_nodes, dtype=np.int32)
    neighbors = np.concatenate(neighbors, axis=-1)
    ts = np.concatenate(ts, axis=0)
    rels = np.concatenate(rels, axis=0)
    n_batch, n_idx = np.unique(neighbors, return_inverse=True)

    neigh_x = tgat_forward_ref(params, graph, n_batch, cfg, start_t, end_t, layer - 1)
    neigh_x = neigh_x[jnp.asarray(n_idx, dtype=jnp.int32)]

    te_neigh = _ref_timekernel(ts, params["tk_w"], params["tk_b"], cfg["tk_norm"], t_feats)
    neigh_feat = jnp.concatenate([neigh_x, te_neigh, jnp.asarray(rels, jnp.float32)], axis=-1)

    te_src = _ref_timekernel(jnp.zeros((1, 1), jnp.float32),
                             params["tk_w"], params["tk_b"], cfg["tk_norm"], t_feats)

    src_in = jnp.concatenate(
        [src_x, jnp.tile(te_src, (bs, 1)), jnp.tile(params["src_param"], (bs, 1))], axis=-1
    )[jnp.asarray(non_leaf_nodes)]
    neigh_feat = neigh_feat.reshape(non_leaf_nodes.shape[0], nsize, d_size)

    val = _ref_mha(src_in, neigh_feat, params["attn"], cfg["heads"])
    full_val = jnp.zeros((bs, d_size), jnp.float32).at[jnp.asarray(non_leaf_nodes)].set(val)

    out = _ref_mlp(jnp.concatenate([src_x, full_val], axis=1),
                   params["merge_w1"], params["merge_b1"],
                   params["merge_w2"], params["merge_b2"])
    if layer == layers:
        return _ref_linear(out, params["proj_out_w"], params["proj_out_b"], "tanh")
    return out


# ------------------------------ parameters ----------------------------------

def init_params(key, cfg):
    in_feats, hidden, out = cfg["in_feats"], cfg["hidden"], cfg["out"]
    t_feats, edge_feats, heads, d = cfg["t_feats"], cfg["edge_feats"], cfg["heads"], cfg["d_size"]
    ks = jax.random.split(key, 20)

    def nrm(k, shape, std):
        return (std * jax.random.normal(k, shape)).astype(jnp.float32)

    p = {}
    p["proj_in_w"] = nrm(ks[0], (hidden, in_feats), math.sqrt(2.0 / (in_feats + hidden)))
    p["proj_in_b"] = nrm(ks[1], (hidden,), 0.1)
    p["tk_w"] = nrm(ks[2], (t_feats // 2, 1), 1.0)
    p["tk_b"] = nrm(ks[3], (t_feats // 2,), 1.0)
    std_qkv = math.sqrt(2.0 / (d + d))
    p["attn"] = {
        "w_qs": nrm(ks[4], (heads * d, d), std_qkv),
        "w_ks": nrm(ks[5], (heads * d, d), std_qkv),
        "w_vs": nrm(ks[6], (heads * d, d), std_qkv),
        "fc_w": nrm(ks[7], (d, heads * d), math.sqrt(2.0 / (d + heads * d))),
        "fc_b": nrm(ks[8], (d,), 0.1),
        "ln_g": jnp.ones((d,), jnp.float32),
        "ln_b": jnp.zeros((d,), jnp.float32),
    }
    p["merge_w1"] = nrm(ks[9], (hidden, hidden + d), math.sqrt(2.0 / (hidden + d + hidden)))
    p["merge_b1"] = nrm(ks[10], (hidden,), 0.1)
    p["merge_w2"] = nrm(ks[11], (hidden, hidden), math.sqrt(1.0 / hidden))
    p["merge_b2"] = nrm(ks[12], (hidden,), 0.1)
    p["proj_out_w"] = nrm(ks[13], (out, hidden), math.sqrt(2.0 / (hidden + out)))
    p["proj_out_b"] = nrm(ks[14], (out,), 0.1)
    p["src_param"] = jax.random.uniform(ks[15], (1, edge_feats), jnp.float32)
    return p


# --------------------------------- main --------------------------------------

if __name__ == "__main__":
    IN_FEATS, EDGE_FEATS, T_FEATS = 8, 4, 8
    HIDDEN, OUT, LAYERS, HEADS = 16, 8, 1, 2
    NSIZE, N_NODES, DEG = 8, 10, 5
    D_SIZE = HIDDEN + EDGE_FEATS + T_FEATS

    cfg = dict(in_feats=IN_FEATS, edge_feats=EDGE_FEATS, t_feats=T_FEATS,
               hidden=HIDDEN, out=OUT, layers=LAYERS, heads=HEADS,
               neighborhood_size=NSIZE, d_size=D_SIZE,
               tk_norm=math.sqrt(1.0 / (T_FEATS // 2)))

    key = jax.random.PRNGKey(0)
    kx, kp = jax.random.split(key)
    x = jax.random.normal(kx, (N_NODES, IN_FEATS), jnp.float32)

    # deterministic synthetic adjacency; node 2 has NO spawn edges -> leaf path
    adj = {}
    for node in range(N_NODES):
        nbrs = np.array([(node + 1 + j) % N_NODES for j in range(DEG)], dtype=np.int64)
        t = (0.5 * np.arange(1, DEG + 1, dtype=np.float32) + 0.1 * node).reshape(DEG, 1)
        rel = np.zeros((DEG, EDGE_FEATS), dtype=np.float32)
        if node != 2:
            rel[::2, 0] = 1.0                        # "spawn" edges
        rel[:, 1:] = 0.05 * (node + 1) * np.arange(1, EDGE_FEATS, dtype=np.float32)
        adj[node] = (nbrs, t, rel)
    graph = SyntheticGraph(x, adj)

    params = init_params(kp, cfg)
    prep = prepare_params(params, cfg)
    batch = np.array([0, 1, 2, 3], dtype=np.int64)

    out = tgat_forward_pallas(prep, graph, batch, cfg)
    out = jax.block_until_ready(out)
    assert out.shape == (batch.shape[0], OUT)

    ref = tgat_forward_ref(params, graph, batch, cfg)
    ref = jax.block_until_ready(ref)
    np.testing.assert_allclose(np.asarray(out), np.asarray(ref), rtol=2e-2, atol=2e-2)

    print("KERNEL_OK")
</pallas_src>

<mosaic_0001>
module attributes {stable_mosaic.version = 11 : i64} {
  func.func @_proj_in_kernel(%arg0: memref<16x8xf32, #tpu.memory_space<vmem>>, %arg1: memref<16x128xf32, #tpu.memory_space<vmem>>, %arg2: memref<16x128xf32, #tpu.memory_space<vmem>>) attributes {dimension_semantics = [], scalar_prefetch = 0 : i64, scratch_operands = 0 : i64, tpu.core_type = #tpu.core_type<tc>} {
    %c0 = arith.constant 0 : index
    %c0_0 = arith.constant 0 : index
    %0 = vector.load %arg0[%c0, %c0_0] : memref<16x8xf32, #tpu.memory_space<vmem>>, vector<16x8xf32>
    %c0_1 = arith.constant 0 : index
    %c0_2 = arith.constant 0 : index
    %1 = vector.load %arg1[%c0_1, %c0_2] : memref<16x128xf32, #tpu.memory_space<vmem>>, vector<8x128xf32>
    %cst = arith.constant dense<0.000000e+00> : vector<16x128xf32>
    %2 = tpu.matmul %0, %1, %cst {dimension_numbers = #tpu.dot_dimension_numbers<[1], [0], [0], [1], [0, 0, 1, 1], [], []>} : vector<16x8xf32>, vector<8x128xf32>, vector<16x128xf32> -> vector<16x128xf32>
    %c8 = arith.constant 8 : index
    %c0_3 = arith.constant 0 : index
    %3 = vector.load %arg1[%c8, %c0_3] : memref<16x128xf32, #tpu.memory_space<vmem>>, vector<1x128xf32>
    %4 = vector.broadcast %3 : vector<1x128xf32> to vector<16x128xf32>
    %5 = arith.addf %2, %4 : vector<16x128xf32>
    %cst_4 = arith.constant 0.000000e+00 : f32
    %6 = vector.broadcast %cst_4 : f32 to vector<16x128xf32>
    %7 = arith.maximumf %5, %6 : vector<16x128xf32>
    %c0_5 = arith.constant 0 : index
    %c0_6 = arith.constant 0 : index
    %8 = vector.load %arg2[%c0_5, %c0_6] : memref<16x128xf32, #tpu.memory_space<vmem>>, vector<16x128xf32>
    tpu.vector_store %arg2[%c0_5, %c0_6], %7 {strides = array<i32>} : memref<16x128xf32, #tpu.memory_space<vmem>>, vector<16x128xf32>,
    return
  }
}

</mosaic_0001>

<llo_original>
// kernel: _level0_device.1
$region0: #{_level0_device.1}
  #allocation0 [shape = 'u32[]', space=smem, size = 0x4, offset = 0x4, fixed_abs, tag = 'smem constant byte address 0x4 - core index']
  #allocation1 [shape = 'u32[144,128]{1,0:T(1,128)}', space=vmem, size = 0x12000, scoped, tag = 'internal scratch']
  %s0 = inlined_call_operand.vmem [shape: f32[16,8], index: 0, kind: input, shape index: {}]
  %s1 = inlined_call_operand.vmem [shape: f32[16,128], index: 1, kind: input, shape index: {}]
  %s2 = inlined_call_operand.hbm [shape: f32[16,128], index: 2, kind: output, shape index: {}]
  %s3 = sld [smem:[#allocation0]]
  $region18: #{_level0_device.1} parent=0
    _
  %s5 = ssub.s32 1, %s3
  %s6 = scalar_select 0, %s5, %s3
  $region1: #{_level0_device.1} parent=0
    #allocation2 [shape = 'u8[8192]{0}', space=vmem, size = 0x2000, scoped, tag = 'output window, operand 0, single buffered']
    #allocation3 [shape = 's32[1]{0}', space=sflag, size = 0x4, scoped, tag = 'scoped memory for _level0_device.1']
    %7 = vsyncpa [#allocation3], 0
    // Predicated region
    $region2: #{_level0_device.1} parent=1 // pred_check
      _
    $region3: #{_level0_device.1} parent=1 // pred_check_branch
      %9 = sbr.rel (0) target = $region5
    $region4: #{_level0_device.1} parent=1 // pred_region
      _
    $region5: #{_level0_device.1} parent=1 // pred_fallthru
      _
    // Predicated region
    $region6: #{_level0_device.1} parent=1 // pred_check
      _
    $region7: #{_level0_device.1} parent=1 // pred_check_branch
      %11 = sbr.rel (0) target = $region9
    $region8: #{_level0_device.1} parent=1 // pred_region
      _
    $region9: #{_level0_device.1} parent=1 // pred_fallthru
      _
    %v12 = vld [vmem:[%s0] sm:$0xff]
    %v13 = vld [vmem:[%s0 + $0x8] sm:$0xff]
    %v14 = vld [vmem:[%s1] sm:$0xff]
    %v15 = vld [vmem:[%s1 + $0x8] sm:$0x1]
    %v16 = vlaneseq
    %v17 = vshrl.u32 %v16, 7
    %v18 = vsub.s32 0, %v17
    %v19 = vrot.slane %v15, %v18
    %vm20 = vcmask 64512
    %v22 = vsel %vm20, %v12, 0
    %v25 = vsel %vm20, %v13, 0
    %27 = vmatprep.subr.mxu0 0.0
    %28 = vmatpush1.msra.mxu0 0.0
    %29 = vmatprep.subr.mxu0 0.0
    %30 = vmatpush1.msra.mxu0 0.0
    %31 = vmatprep.subr.mxu0 0.0
    %32 = vmatpush1.msra.mxu0 0.0
    %33 = vmatprep.subr.mxu0 0.0
    %34 = vmatpush1.msra.mxu0 0.0
    %35 = vmatprep.subr.mxu0 0.0
    %36 = vmatpush1.msra.mxu0 0.0
    %37 = vmatprep.subr.mxu0 0.0
    %38 = vmatpush1.msra.mxu0 0.0
    %39 = vmatprep.subr.mxu0 0.0
    %40 = vmatpush1.msra.mxu0 0.0
    %41 = vmatprep.subr.mxu0 0.0
    %42 = vmatpush1.msra.mxu0 0.0
    %43 = vmatprep.subr.mxu0 0.0
    %44 = vmatpush1.msra.mxu0 0.0
    %45 = vmatprep.subr.mxu0 0.0
    %46 = vmatpush1.msra.mxu0 0.0
    %47 = vmatprep.subr.mxu0 0.0
    %48 = vmatpush1.msra.mxu0 0.0
    %49 = vmatprep.subr.mxu0 0.0
    %50 = vmatpush1.msra.mxu0 0.0
    %51 = vmatprep.subr.mxu0 0.0
    %52 = vmatpush1.msra.mxu0 0.0
    %53 = vmatprep.subr.mxu0 0.0
    %54 = vmatpush1.msra.mxu0 0.0
    %55 = vmatprep.subr.mxu0 0.0
    %56 = vmatpush1.msra.mxu0 0.0
    %57 = vmatprep.subr.mxu0 0.0
    %58 = vmatpush1.msra.mxu0 %v14
    %59 = vmatprep.subr.mxu0 0.0
    %60 = vmatpush2.msra.mxu0 0.0
    %61 = vmatprep.subr.mxu0 0.0
    %62 = vmatpush2.msra.mxu0 0.0
    %63 = vmatprep.subr.mxu0 0.0
    %64 = vmatpush2.msra.mxu0 0.0
    %65 = vmatprep.subr.mxu0 0.0
    %66 = vmatpush2.msra.mxu0 0.0
    %67 = vmatprep.subr.mxu0 0.0
    %68 = vmatpush2.msra.mxu0 0.0
    %69 = vmatprep.subr.mxu0 0.0
    %70 = vmatpush2.msra.mxu0 0.0
    %71 = vmatprep.subr.mxu0 0.0
    %72 = vmatpush2.msra.mxu0 0.0
    %73 = vmatprep.subr.mxu0 0.0
    %74 = vmatpush2.msra.mxu0 0.0
    %75 = vmatprep.subr.mxu0 0.0
    %76 = vmatpush2.msra.mxu0 0.0
    %77 = vmatprep.subr.mxu0 0.0
    %78 = vmatpush2.msra.mxu0 0.0
    %79 = vmatprep.subr.mxu0 0.0
    %80 = vmatpush2.msra.mxu0 0.0
    %81 = vmatprep.subr.mxu0 0.0
    %82 = vmatpush2.msra.mxu0 0.0
    %83 = vmatprep.subr.mxu0 0.0
    %84 = vmatpush2.msra.mxu0 0.0
    %85 = vmatprep.subr.mxu0 0.0
    %86 = vmatpush2.msra.mxu0 0.0
    %87 = vmatprep.subr.mxu0 0.0
    %88 = vmatpush2.msra.mxu0 0.0
    %89 = vmatprep.subr.mxu0 0.0
    %90 = vmatpush2.msra.mxu0 0.0
    %91 = vmatprep.mubr.f32.mxu0 0.0
    %92 = vmatmul.mubr.f32.gmra.mxu0 %v22
    %v93 = vpop.f32.mrf.mxu0
    %v94 = vadd.f32 %v19, %v93
    %v95 = vpop.f32.mrf.mxu0
    %96 = vmatprep.mubr.f32.mxu0 0.0
    %97 = vmatmul.mubr.f32.gmra.mxu0 %v25
    %v98 = vpop.f32.mrf.mxu0
    %v99 = vadd.f32 %v19, %v98
    %v100 = vpop.f32.mrf.mxu0
    %101 = vdwg.mxu0
    %v102 = vmax.f32 %v94, 0.0
    %v103 = vmax.f32 %v99, 0.0
    %104 = vst [vmem:[#allocation2] sm:$0xff] %v102
    %105 = vst [vmem:[#allocation2 + $0x8] sm:$0xff] %v103
    // Predicated region
    $region10: #{_level0_device.1} parent=1 // pred_check
      _
    $region11: #{_level0_device.1} parent=1 // pred_check_branch
      %107 = sbr.rel (0) target = $region13
    $region12: #{_level0_device.1} parent=1 // pred_region
      %s109 = ssub.s32 256, 256
      %110 = vsyncadd [#allocation3], %s109
      %s111 = sshll.u32 [#allocation2], 4
      %s112 = int_to_ptr.vmem [resolvable:$true] %s111
      %117 = dma.vmem_to_hbm [thread:$0]  %s112, 256, %s2, [#allocation3], 128, 128, 8
    $region13: #{_level0_device.1} parent=1 // pred_fallthru
      _
    // Predicated region
    $region14: #{_level0_device.1} parent=1 // pred_check
      _
    $region15: #{_level0_device.1} parent=1 // pred_check_branch
      %119 = sbr.rel (0) target = $region17
    $region16: #{_level0_device.1} parent=1 // pred_region
      %120 = dma.done [#allocation3], 256
    $region17: #{_level0_device.1} parent=1 // pred_fallthru
      _
    %121 = vsyncpa [#allocation3], 1

</llo_original>
